<compile_context>
chip_gen: v7x
topology: tpu7x:2x2x1
jax: 0.10.0
libtpu: 0.0.40
codegen_flags: <defaults>
</compile_context>

<pallas_src>
import functools

import jax
import jax.numpy as jnp
import numpy as np
from jax.experimental import pallas as pl
from jax.experimental.pallas import tpu as pltpu

_LANE = 128
_VMEM_LIMIT_BYTES = 32 * 1024 * 1024  # safe on v5e/v6e (128 MiB) and v7x (64 MiB)


def _round_up(x, m):
    return ((x + m - 1) // m) * m


# ---------------------------------------------------------------------------
# Kernel 1: generic GCN layer   out = act(adj @ (x @ W))
# grid = (row_tiles, reduction_tiles); adj-column reduction is last / arbitrary.
# ---------------------------------------------------------------------------
def _gcn_layer_kernel(adj_ref, x_ref, w_ref, out_ref, acc_ref, *, apply_relu):
    k = pl.program_id(1)

    @pl.when(k == 0)
    def _init():
        acc_ref[...] = jnp.zeros_like(acc_ref)

    xw = jnp.dot(x_ref[...], w_ref[...], preferred_element_type=jnp.float32)
    acc_ref[...] += jnp.dot(adj_ref[...], xw, preferred_element_type=jnp.float32)

    @pl.when(k == pl.num_programs(1) - 1)
    def _finalize():
        acc = acc_ref[...]
        if apply_relu:
            acc = jnp.maximum(acc, 0.0)
        out_ref[...] = acc.astype(out_ref.dtype)


# ---------------------------------------------------------------------------
# Kernel 2: second GCN layer with fused [W_mu | W_sigma] + reparameterization
#   acc = adj @ (hidden @ [W_mu | W_sigma])    -> [tile, 2*h2p]
#   z   = noise * exp(logstd) + mean
# ---------------------------------------------------------------------------
def _gcn_reparam_kernel(adj_ref, h_ref, wcat_ref, noise_ref, z_ref, acc_ref, *, h2p):
    k = pl.program_id(1)

    @pl.when(k == 0)
    def _init():
        acc_ref[...] = jnp.zeros_like(acc_ref)

    hw = jnp.dot(h_ref[...], wcat_ref[...], preferred_element_type=jnp.float32)
    acc_ref[...] += jnp.dot(adj_ref[...], hw, preferred_element_type=jnp.float32)

    @pl.when(k == pl.num_programs(1) - 1)
    def _finalize():
        mean = acc_ref[:, :h2p]
        logstd = acc_ref[:, h2p:]
        z_ref[...] = (noise_ref[...] * jnp.exp(logstd) + mean).astype(z_ref.dtype)


# ---------------------------------------------------------------------------
# Kernel 3: dot-product decoder   A_pred[i_tile, j_tile] = sigmoid(Z_i @ Z_j^T)
# ---------------------------------------------------------------------------
def _decoder_kernel(zi_ref, zj_ref, out_ref):
    logits = jax.lax.dot_general(
        zi_ref[...], zj_ref[...],
        dimension_numbers=(((1,), (1,)), ((), ())),
        preferred_element_type=jnp.float32,
    )
    out_ref[...] = jax.nn.sigmoid(logits).astype(out_ref.dtype)


def vgae_forward(x, adj, w0, w_mu, w_sigma, noise):
    n, d = x.shape
    h1 = w0.shape[1]
    h2 = w_mu.shape[1]
    f32 = jnp.float32

    # Tile choice: 256 fills the v6e/v7x MXU; 128 keeps small graphs compact and
    # is still MXU-aligned on v5e.
    tile = 256 if n >= 512 else 128
    n_p = _round_up(n, tile)
    d_p = _round_up(d, _LANE)
    h1_p = _round_up(h1, _LANE)
    h2_p = _round_up(h2, _LANE)

    def pad2(a, rows, cols):
        a = a.astype(f32)
        return jnp.pad(a, ((0, rows - a.shape[0]), (0, cols - a.shape[1])))

    x_p = pad2(x, n_p, d_p)
    adj_p = pad2(adj, n_p, n_p)
    w0_p = pad2(w0, d_p, h1_p)
    w_cat = jnp.concatenate(
        [pad2(w_mu, h1_p, h2_p), pad2(w_sigma, h1_p, h2_p)], axis=1)  # [h1p, 2*h2p]
    noise_p = pad2(noise, n_p, h2_p)

    n_row = n_p // tile   # independent row tiles
    n_red = n_p // tile   # adj-column reduction tiles

    # ---- layer 1: hidden = relu(adj @ (x @ W0)) ----------------------------
    hidden = pl.pallas_call(
        functools.partial(_gcn_layer_kernel, apply_relu=True),
        out_shape=jax.ShapeDtypeStruct((n_p, h1_p), f32),
        grid_spec=pltpu.PrefetchScalarGridSpec(
            num_scalar_prefetch=0,
            grid=(n_row, n_red),
            in_specs=[
                pl.BlockSpec((tile, tile), lambda i, k: (i, k)),    # adj tile
                pl.BlockSpec((tile, d_p), lambda i, k: (k, 0)),     # x rows for this k
                pl.BlockSpec((d_p, h1_p), lambda i, k: (0, 0)),     # W0 (resident)
            ],
            out_specs=pl.BlockSpec((tile, h1_p), lambda i, k: (i, 0)),
            scratch_shapes=[pltpu.VMEM((tile, h1_p), f32)],
        ),
        compiler_params=pltpu.CompilerParams(
            dimension_semantics=("parallel", "arbitrary"),
            vmem_limit_bytes=_VMEM_LIMIT_BYTES,
        ),
        cost_estimate=pl.CostEstimate(
            flops=2 * n_p * n_p * h1_p + 2 * n_p * d_p * h1_p * n_row,
            transcendentals=0,
            bytes_accessed=4 * (n_p * n_p + n_p * d_p * n_row + d_p * h1_p + n_p * h1_p),
        ),
    )(adj_p, x_p, w0_p)

    # ---- layer 2 + reparam: z = noise*exp(adj@(h@Wsig)) + adj@(h@Wmu) -------
    z = pl.pallas_call(
        functools.partial(_gcn_reparam_kernel, h2p=h2_p),
        out_shape=jax.ShapeDtypeStruct((n_p, h2_p), f32),
        grid_spec=pltpu.PrefetchScalarGridSpec(
            num_scalar_prefetch=0,
            grid=(n_row, n_red),
            in_specs=[
                pl.BlockSpec((tile, tile), lambda i, k: (i, k)),        # adj tile
                pl.BlockSpec((tile, h1_p), lambda i, k: (k, 0)),        # hidden rows
                pl.BlockSpec((h1_p, 2 * h2_p), lambda i, k: (0, 0)),    # [W_mu|W_sigma]
                pl.BlockSpec((tile, h2_p), lambda i, k: (i, 0)),        # noise rows
            ],
            out_specs=pl.BlockSpec((tile, h2_p), lambda i, k: (i, 0)),
            scratch_shapes=[pltpu.VMEM((tile, 2 * h2_p), f32)],
        ),
        compiler_params=pltpu.CompilerParams(
            dimension_semantics=("parallel", "arbitrary"),
            vmem_limit_bytes=_VMEM_LIMIT_BYTES,
        ),
        cost_estimate=pl.CostEstimate(
            flops=2 * n_p * n_p * (2 * h2_p) + 2 * n_p * h1_p * (2 * h2_p) * n_row,
            transcendentals=n_p * h2_p,
            bytes_accessed=4 * (n_p * n_p + n_p * h1_p * n_row
                                + h1_p * 2 * h2_p + 2 * n_p * h2_p),
        ),
    )(adj_p, hidden, w_cat, noise_p)

    # ---- decoder: A_pred = sigmoid(Z @ Z.T), 2-D tiled over the output ------
    # TODO(synk): emit bf16 A_pred if the downstream consumer tolerates it
    # (decoder is HBM-writeback bound); kept f32 here for exact parity.
    a_pred = pl.pallas_call(
        _decoder_kernel,
        out_shape=jax.ShapeDtypeStruct((n_p, n_p), f32),
        grid_spec=pltpu.PrefetchScalarGridSpec(
            num_scalar_prefetch=0,
            grid=(n_row, n_row),
            in_specs=[
                pl.BlockSpec((tile, h2_p), lambda i, j: (i, 0)),   # Z row tile
                pl.BlockSpec((tile, h2_p), lambda i, j: (j, 0)),   # Z col tile
            ],
            out_specs=pl.BlockSpec((tile, tile), lambda i, j: (i, j)),
        ),
        compiler_params=pltpu.CompilerParams(
            dimension_semantics=("parallel", "parallel"),
            vmem_limit_bytes=_VMEM_LIMIT_BYTES,
        ),
        cost_estimate=pl.CostEstimate(
            flops=2 * n_p * n_p * h2_p,
            transcendentals=n_p * n_p,
            bytes_accessed=4 * (n_p * n_p + 2 * n_p * h2_p * n_row),
        ),
    )(z, z)

    return a_pred[:n, :n]


def glorot_init(key, input_dim, output_dim):
    init_range = np.sqrt(6.0 / (input_dim + output_dim))
    u = jax.random.uniform(key, (input_dim, output_dim), dtype=jnp.float32)
    return u * 2.0 * init_range - init_range


if __name__ == "__main__":
    # Small synthetic problem: N nodes, feature dims consistent with VGAE.
    N = 16            # number of graph nodes
    INPUT_DIM = 32    # args.input_dim
    HIDDEN1 = 32      # args.hidden1_dim
    HIDDEN2 = 16      # args.hidden2_dim

    key = jax.random.PRNGKey(0)
    k_x, k_adj, k_w0, k_wmu, k_wsig, k_noise = jax.random.split(key, 6)

    # Node features.
    x = jax.random.normal(k_x, (N, INPUT_DIM), dtype=jnp.float32)

    # Symmetric, row-normalized dense adjacency (deterministic).
    a_raw = (jax.random.uniform(k_adj, (N, N)) < 0.3).astype(jnp.float32)
    a_sym = jnp.maximum(a_raw, a_raw.T) + jnp.eye(N, dtype=jnp.float32)
    deg = jnp.sum(a_sym, axis=1, keepdims=True)
    adj = a_sym / deg

    # Glorot-initialized weights (matches module shapes).
    w0 = glorot_init(k_w0, INPUT_DIM, HIDDEN1)
    w_mu = glorot_init(k_wmu, HIDDEN1, HIDDEN2)
    w_sigma = glorot_init(k_wsig, HIDDEN1, HIDDEN2)

    # Reparameterization noise: torch.randn(X.size(0), hidden2_dim).
    noise = jax.random.normal(k_noise, (N, HIDDEN2), dtype=jnp.float32)

    a_pred = vgae_forward(x, adj, w0, w_mu, w_sigma, noise)
    a_pred = jax.block_until_ready(a_pred)

    # Pure-JAX reference check.
    hidden_ref = jnp.maximum(adj @ (x @ w0), 0.0)
    mean_ref = adj @ (hidden_ref @ w_mu)
    logstd_ref = adj @ (hidden_ref @ w_sigma)
    z_ref = noise * jnp.exp(logstd_ref) + mean_ref
    a_ref = jax.nn.sigmoid(z_ref @ z_ref.T)
    np.testing.assert_allclose(np.asarray(a_pred), np.asarray(a_ref),
                               rtol=1e-5, atol=1e-5)

    print("KERNEL_OK")
</pallas_src>

<mosaic_0001>
module attributes {stable_mosaic.version = 11 : i64} {
  func.func @_gcn_layer_kernel(%arg0: i32, %arg1: i32, %arg2: memref<128x128xf32, #tpu.memory_space<vmem>>, %arg3: memref<128x128xf32, #tpu.memory_space<vmem>>, %arg4: memref<128x128xf32, #tpu.memory_space<vmem>>, %arg5: memref<128x128xf32, #tpu.memory_space<vmem>>, %arg6: memref<128x128xf32, #tpu.memory_space<vmem>>) attributes {dimension_semantics = [#tpu.dimension_semantics<parallel>, #tpu.dimension_semantics<arbitrary>], iteration_bounds = array<i64: 1, 1>, scalar_prefetch = 0 : i64, scratch_operands = 1 : i64, tpu.core_type = #tpu.core_type<tc>, window_params = [{transform_indices = @transform_0, window_bounds = array<i64: 128, 128>}, {transform_indices = @transform_1, window_bounds = array<i64: 128, 128>}, {pipeline_mode = #tpu.pipeline_mode<synchronous>, transform_indices = @transform_2, window_bounds = array<i64: 128, 128>}, {transform_indices = @transform_3, window_bounds = array<i64: 128, 128>}]} {
    %c0_i32 = arith.constant 0 : i32
    %0 = arith.cmpi eq, %arg1, %c0_i32 : i32
    %1 = arith.extui %0 : i1 to i32
    %c0_i32_0 = arith.constant 0 : i32
    %2 = arith.cmpi ne, %1, %c0_i32_0 : i32
    scf.if %2 {
      %cst_13 = arith.constant 0.000000e+00 : f32
      %14 = vector.broadcast %cst_13 : f32 to vector<128x128xf32>
      %c0_14 = arith.constant 0 : index
      %c0_15 = arith.constant 0 : index
      %15 = vector.load %arg6[%c0_14, %c0_15] : memref<128x128xf32, #tpu.memory_space<vmem>>, vector<128x128xf32>
      tpu.vector_store %arg6[%c0_14, %c0_15], %14 {strides = array<i32>} : memref<128x128xf32, #tpu.memory_space<vmem>>, vector<128x128xf32>,
    } else {
    }
    %c0 = arith.constant 0 : index
    %c0_1 = arith.constant 0 : index
    %3 = vector.load %arg3[%c0, %c0_1] : memref<128x128xf32, #tpu.memory_space<vmem>>, vector<128x128xf32>
    %c0_2 = arith.constant 0 : index
    %c0_3 = arith.constant 0 : index
    %4 = vector.load %arg4[%c0_2, %c0_3] : memref<128x128xf32, #tpu.memory_space<vmem>>, vector<128x128xf32>
    %cst = arith.constant dense<0.000000e+00> : vector<128x128xf32>
    %5 = tpu.matmul %3, %4, %cst {dimension_numbers = #tpu.dot_dimension_numbers<[1], [0], [0], [1], [0, 0, 1, 1], [], []>} : vector<128x128xf32>, vector<128x128xf32>, vector<128x128xf32> -> vector<128x128xf32>
    %c0_4 = arith.constant 0 : index
    %c0_5 = arith.constant 0 : index
    %6 = vector.load %arg6[%c0_4, %c0_5] : memref<128x128xf32, #tpu.memory_space<vmem>>, vector<128x128xf32>
    %c0_6 = arith.constant 0 : index
    %c0_7 = arith.constant 0 : index
    %7 = vector.load %arg2[%c0_6, %c0_7] : memref<128x128xf32, #tpu.memory_space<vmem>>, vector<128x128xf32>
    %cst_8 = arith.constant dense<0.000000e+00> : vector<128x128xf32>
    %8 = tpu.matmul %7, %5, %cst_8 {dimension_numbers = #tpu.dot_dimension_numbers<[1], [0], [0], [1], [0, 0, 1, 1], [], []>} : vector<128x128xf32>, vector<128x128xf32>, vector<128x128xf32> -> vector<128x128xf32>
    %9 = arith.addf %6, %8 : vector<128x128xf32>
    %c0_9 = arith.constant 0 : index
    %c0_10 = arith.constant 0 : index
    %10 = vector.load %arg6[%c0_9, %c0_10] : memref<128x128xf32, #tpu.memory_space<vmem>>, vector<128x128xf32>
    tpu.vector_store %arg6[%c0_9, %c0_10], %9 {strides = array<i32>} : memref<128x128xf32, #tpu.memory_space<vmem>>, vector<128x128xf32>,
    %c0_i32_11 = arith.constant 0 : i32
    %11 = arith.cmpi eq, %arg1, %c0_i32_11 : i32
    %12 = arith.extui %11 : i1 to i32
    %c0_i32_12 = arith.constant 0 : i32
    %13 = arith.cmpi ne, %12, %c0_i32_12 : i32
    scf.if %13 {
      %c0_13 = arith.constant 0 : index
      %c0_14 = arith.constant 0 : index
      %14 = vector.load %arg6[%c0_13, %c0_14] : memref<128x128xf32, #tpu.memory_space<vmem>>, vector<128x128xf32>
      %cst_15 = arith.constant 0.000000e+00 : f32
      %15 = vector.broadcast %cst_15 : f32 to vector<128x128xf32>
      %16 = arith.maximumf %14, %15 : vector<128x128xf32>
      %c0_16 = arith.constant 0 : index
      %c0_17 = arith.constant 0 : index
      %17 = vector.load %arg5[%c0_16, %c0_17] : memref<128x128xf32, #tpu.memory_space<vmem>>, vector<128x128xf32>
      tpu.vector_store %arg5[%c0_16, %c0_17], %16 {strides = array<i32>} : memref<128x128xf32, #tpu.memory_space<vmem>>, vector<128x128xf32>,
    } else {
    }
    return
  }
  func.func @transform_0(%arg0: i32, %arg1: i32) -> (i32, i32) {
    %c0_i32 = arith.constant 0 : i32
    return %arg0, %arg1 : i32, i32
  }
  func.func @transform_1(%arg0: i32, %arg1: i32) -> (i32, i32) {
    %c0_i32 = arith.constant 0 : i32
    %c0_i32_0 = arith.constant 0 : i32
    return %arg1, %c0_i32 : i32, i32
  }
  func.func @transform_2(%arg0: i32, %arg1: i32) -> (i32, i32) {
    %c0_i32 = arith.constant 0 : i32
    %c0_i32_0 = arith.constant 0 : i32
    %c0_i32_1 = arith.constant 0 : i32
    return %c0_i32, %c0_i32_0 : i32, i32
  }
  func.func @transform_3(%arg0: i32, %arg1: i32) -> (i32, i32) {
    %c0_i32 = arith.constant 0 : i32
    %c0_i32_0 = arith.constant 0 : i32
    return %arg0, %c0_i32 : i32, i32
  }
}

</mosaic_0001>

<llo_original>
// kernel: tpu_custom_call.1
$region0: #{tpu_custom_call.1}
  #allocation0 [shape = 'u32[]', space=smem, size = 0x4, offset = 0x4, fixed_abs, tag = 'smem constant byte address 0x4 - core index']
  #allocation1 [shape = 'u32[144,128]{1,0:T(1,128)}', space=vmem, size = 0x12000, scoped, tag = 'internal scratch']
  #allocation2 [shape = 'f32[128,128]{1,0:T(8,128)}', space=vmem, size = 0x10000, scoped, tag = 'scratch operand']
  %s0 = inlined_call_operand.hbm [shape: f32[128,128], index: 0, kind: input, shape index: {}]
  %s1 = inlined_call_operand.hbm [shape: f32[128,128], index: 1, kind: input, shape index: {}]
  %s2 = inlined_call_operand.hbm [shape: f32[128,128], index: 2, kind: input, shape index: {}]
  %s3 = inlined_call_operand.hbm [shape: f32[128,128], index: 3, kind: output, shape index: {}]
  %s4 = sld [smem:[#allocation0]]
  $region42: #{tpu_custom_call.1} parent=0
    _
  %s6 = ssub.s32 1, %s4
  %s7 = scalar_select 0, %s6, %s4
  $region1: #{tpu_custom_call.1} parent=0
    #allocation3 [shape = 'u8[65536]{0}', space=vmem, size = 0x10000, scoped, tag = 'input window, operand 0, single buffered']
    #allocation4 [shape = 's32[1]{0}', space=sflag, size = 0x4, scoped, tag = 'scoped memory for tpu_custom_call.1']
    #allocation5 [shape = 's32[1]{0}', space=sflag, size = 0x4, scoped, tag = 'scoped memory for tpu_custom_call.1']
    #allocation6 [shape = 'u8[65536]{0}', space=vmem, size = 0x10000, scoped, tag = 'input window, operand 1, single buffered']
    #allocation7 [shape = 's32[1]{0}', space=sflag, size = 0x4, scoped, tag = 'scoped memory for tpu_custom_call.1']
    #allocation8 [shape = 'u8[65536]{0}', space=vmem, size = 0x10000, scoped, tag = 'input window, operand 2, single buffered']
    #allocation9 [shape = 'u8[65536]{0}', space=vmem, size = 0x10000, scoped, tag = 'output window, operand 0, single buffered']
    %8 = vsyncpa [#allocation4], 0
    %9 = vsyncpa [#allocation7], 0
    %10 = vsyncpa [#allocation5], 0
    // Predicated region
    $region2: #{tpu_custom_call.1} parent=1 // pred_check
      _
    $region3: #{tpu_custom_call.1} parent=1 // pred_check_branch
      %12 = sbr.rel (0) target = $region5
    $region4: #{tpu_custom_call.1} parent=1 // pred_region
      %s14 = ssub.s32 2048, 2048
      %15 = vsyncadd [#allocation4], %s14
      %s16 = sshll.u32 [#allocation3], 4
      %s17 = int_to_ptr.vmem [resolvable:$true] %s16
      %22 = dma.hbm_to_vmem [thread:$0]  %s0, 2048, %s17, [#allocation4], 128, 128, 8
    $region5: #{tpu_custom_call.1} parent=1 // pred_fallthru
      _
    // Predicated region
    $region6: #{tpu_custom_call.1} parent=1 // pred_check
      _
    $region7: #{tpu_custom_call.1} parent=1 // pred_check_branch
      %24 = sbr.rel (0) target = $region9
    $region8: #{tpu_custom_call.1} parent=1 // pred_region
      %s26 = ssub.s32 2048, 2048
      %27 = vsyncadd [#allocation7], %s26
      %s28 = sshll.u32 [#allocation6], 4
      %s29 = int_to_ptr.vmem [resolvable:$true] %s28
      %34 = dma.hbm_to_vmem [thread:$0]  %s1, 2048, %s29, [#allocation7], 128, 128, 8
    $region9: #{tpu_custom_call.1} parent=1 // pred_fallthru
      _
    // Predicated region
    $region10: #{tpu_custom_call.1} parent=1 // pred_check
      _
    $region11: #{tpu_custom_call.1} parent=1 // pred_check_branch
      %36 = sbr.rel (0) target = $region13
    $region12: #{tpu_custom_call.1} parent=1 // pred_region
      %s38 = ssub.s32 2048, 2048
      %39 = vsyncadd [#allocation7], %s38
      %s40 = sshll.u32 [#allocation8], 4
      %s41 = int_to_ptr.vmem [resolvable:$true] %s40
      %46 = dma.hbm_to_vmem [thread:$0]  %s2, 2048, %s41, [#allocation7], 128, 128, 8
    $region13: #{tpu_custom_call.1} parent=1 // pred_fallthru
      _
    // Predicated region
    $region14: #{tpu_custom_call.1} parent=1 // pred_check
      _
    $region15: #{tpu_custom_call.1} parent=1 // pred_check_branch
      %48 = sbr.rel (0) target = $region17
    $region16: #{tpu_custom_call.1} parent=1 // pred_region
      %49 = dma.done [#allocation4], 2048
    $region17: #{tpu_custom_call.1} parent=1 // pred_fallthru
      _
    // Predicated region
    $region18: #{tpu_custom_call.1} parent=1 // pred_check
      _
    $region19: #{tpu_custom_call.1} parent=1 // pred_check_branch
      %51 = sbr.rel (0) target = $region21
    $region20: #{tpu_custom_call.1} parent=1 // pred_region
      %52 = dma.done [#allocation7], 2048
    $region21: #{tpu_custom_call.1} parent=1 // pred_fallthru
      _
    // Predicated region
    $region22: #{tpu_custom_call.1} parent=1 // pred_check
      _
    $region23: #{tpu_custom_call.1} parent=1 // pred_check_branch
      %54 = sbr.rel (0) target = $region25
    $region24: #{tpu_custom_call.1} parent=1 // pred_region
      %55 = dma.done [#allocation7], 2048
    $region25: #{tpu_custom_call.1} parent=1 // pred_fallthru
      _
    %p56 = scmp.eq.s32.totalorder 0, 0
    // Predicated region
    $region26: #{tpu_custom_call.1} parent=1 // pred_check
      %p57 = pneg %p56
    $region27: #{tpu_custom_call.1} parent=1 // pred_check_branch
      %59 = sbr.rel (%p57) target = $region29
    $region28: #{tpu_custom_call.1} parent=1 // pred_region
      %60 = vst [vmem:[#allocation2] sm:$0xff] 0.0
      %61 = vst [vmem:[#allocation2 + $0x8] sm:$0xff] 0.0
      %62 = vst [vmem:[#allocation2 + $0x10] sm:$0xff] 0.0
      %63 = vst [vmem:[#allocation2 + $0x18] sm:$0xff] 0.0
      %64 = vst [vmem:[#allocation2 + $0x20] sm:$0xff] 0.0
      %65 = vst [vmem:[#allocation2 + $0x28] sm:$0xff] 0.0
      %66 = vst [vmem:[#allocation2 + $0x30] sm:$0xff] 0.0
      %67 = vst [vmem:[#allocation2 + $0x38] sm:$0xff] 0.0
      %68 = vst [vmem:[#allocation2 + $0x40] sm:$0xff] 0.0
      %69 = vst [vmem:[#allocation2 + $0x48] sm:$0xff] 0.0
      %70 = vst [vmem:[#allocation2 + $0x50] sm:$0xff] 0.0
      %71 = vst [vmem:[#allocation2 + $0x58] sm:$0xff] 0.0
      %72 = vst [vmem:[#allocation2 + $0x60] sm:$0xff] 0.0
      %73 = vst [vmem:[#allocation2 + $0x68] sm:$0xff] 0.0
      %74 = vst [vmem:[#allocation2 + $0x70] sm:$0xff] 0.0
      %75 = vst [vmem:[#allocation2 + $0x78] sm:$0xff] 0.0
    $region29: #{tpu_custom_call.1} parent=1 // pred_fallthru
      _
    %v76 = vld [vmem:[#allocation6] sm:$0xff]
    %v77 = vld [vmem:[#allocation6 + $0x8] sm:$0xff]
    %v78 = vld [vmem:[#allocation6 + $0x10] sm:$0xff]
    %v79 = vld [vmem:[#allocation6 + $0x18] sm:$0xff]
    %v80 = vld [vmem:[#allocation6 + $0x20] sm:$0xff]
    %v81 = vld [vmem:[#allocation6 + $0x28] sm:$0xff]
    %v82 = vld [vmem:[#allocation6 + $0x30] sm:$0xff]
    %v83 = vld [vmem:[#allocation6 + $0x38] sm:$0xff]
    %v84 = vld [vmem:[#allocation6 + $0x40] sm:$0xff]
    %v85 = vld [vmem:[#allocation6 + $0x48] sm:$0xff]
    %v86 = vld [vmem:[#allocation6 + $0x50] sm:$0xff]
    %v87 = vld [vmem:[#allocation6 + $0x58] sm:$0xff]
    %v88 = vld [vmem:[#allocation6 + $0x60] sm:$0xff]
    %v89 = vld [vmem:[#allocation6 + $0x68] sm:$0xff]
    %v90 = vld [vmem:[#allocation6 + $0x70] sm:$0xff]
    %v91 = vld [vmem:[#allocation6 + $0x78] sm:$0xff]
    %v92 = vld [vmem:[#allocation8] sm:$0xff]
    %v93 = vld [vmem:[#allocation8 + $0x8] sm:$0xff]
    %v94 = vld [vmem:[#allocation8 + $0x10] sm:$0xff]
    %v95 = vld [vmem:[#allocation8 + $0x18] sm:$0xff]
    %v96 = vld [vmem:[#allocation8 + $0x20] sm:$0xff]
    %v97 = vld [vmem:[#allocation8 + $0x28] sm:$0xff]
    %v98 = vld [vmem:[#allocation8 + $0x30] sm:$0xff]
    %v99 = vld [vmem:[#allocation8 + $0x38] sm:$0xff]
    %v100 = vld [vmem:[#allocation8 + $0x40] sm:$0xff]
    %v101 = vld [vmem:[#allocation8 + $0x48] sm:$0xff]
    %v102 = vld [vmem:[#allocation8 + $0x50] sm:$0xff]
    %v103 = vld [vmem:[#allocation8 + $0x58] sm:$0xff]
    %v104 = vld [vmem:[#allocation8 + $0x60] sm:$0xff]
    %v105 = vld [vmem:[#allocation8 + $0x68] sm:$0xff]
    %v106 = vld [vmem:[#allocation8 + $0x70] sm:$0xff]
    %v107 = vld [vmem:[#allocation8 + $0x78] sm:$0xff]
    %108 = vmatprep.subr.mxu0 0.0
    %109 = vmatpush1.msra.mxu0 %v92
    %110 = vmatprep.subr.mxu0 0.0
    %111 = vmatpush1.msra.mxu0 %v93
    %112 = vmatprep.subr.mxu0 0.0
    %113 = vmatpush1.msra.mxu0 %v94
    %114 = vmatprep.subr.mxu0 0.0
    %115 = vmatpush1.msra.mxu0 %v95
    %116 = vmatprep.subr.mxu0 0.0
    %117 = vmatpush1.msra.mxu0 %v96
    %118 = vmatprep.subr.mxu0 0.0
    %119 = vmatpush1.msra.mxu0 %v97
    %120 = vmatprep.subr.mxu0 0.0
    %121 = vmatpush1.msra.mxu0 %v98
    %122 = vmatprep.subr.mxu0 0.0
    %123 = vmatpush1.msra.mxu0 %v99
    %124 = vmatprep.subr.mxu0 0.0
    %125 = vmatpush1.msra.mxu0 %v100
    %126 = vmatprep.subr.mxu0 0.0
    %127 = vmatpush1.msra.mxu0 %v101
    %128 = vmatprep.subr.mxu0 0.0
    %129 = vmatpush1.msra.mxu0 %v102
    %130 = vmatprep.subr.mxu0 0.0
    %131 = vmatpush1.msra.mxu0 %v103
    %132 = vmatprep.subr.mxu0 0.0
    %133 = vmatpush1.msra.mxu0 %v104
    %134 = vmatprep.subr.mxu0 0.0
    %135 = vmatpush1.msra.mxu0 %v105
    %136 = vmatprep.subr.mxu0 0.0
    %137 = vmatpush1.msra.mxu0 %v106
    %138 = vmatprep.subr.mxu0 0.0
    %139 = vmatpush1.msra.mxu0 %v107
    %140 = vmatprep.subr.mxu0 0.0
    %141 = vmatpush1.msra.mxu0 0.0
    %142 = vmatprep.subr.mxu0 0.0
    %143 = vmatpush1.msra.mxu0 0.0
    %144 = vmatprep.subr.mxu0 0.0
    %145 = vmatpush1.msra.mxu0 0.0
    %146 = vmatprep.subr.mxu0 0.0
    %147 = vmatpush1.msra.mxu0 0.0
    %148 = vmatprep.subr.mxu0 0.0
    %149 = vmatpush1.msra.mxu0 0.0
    %150 = vmatprep.subr.mxu0 0.0
    %151 = vmatpush1.msra.mxu0 0.0
    %152 = vmatprep.subr.mxu0 0.0
    %153 = vmatpush1.msra.mxu0 0.0
    %154 = vmatprep.subr.mxu0 0.0
    %155 = vmatpush1.msra.mxu0 0.0
    %156 = vmatprep.subr.mxu0 0.0
    %157 = vmatpush1.msra.mxu0 0.0
    %158 = vmatprep.subr.mxu0 0.0
    %159 = vmatpush1.msra.mxu0 0.0
    %160 = vmatprep.subr.mxu0 0.0
    %161 = vmatpush1.msra.mxu0 0.0
    %162 = vmatprep.subr.mxu0 0.0
    %163 = vmatpush1.msra.mxu0 0.0
    %164 = vmatprep.subr.mxu0 0.0
    %165 = vmatpush1.msra.mxu0 0.0
    %166 = vmatprep.subr.mxu0 0.0
    %167 = vmatpush1.msra.mxu0 0.0
    %168 = vmatprep.subr.mxu0 0.0
    %169 = vmatpush1.msra.mxu0 0.0
    %170 = vmatprep.subr.mxu0 0.0
    %171 = vmatpush1.msra.mxu0 0.0
    %172 = vmatprep.mubr.f32.mxu0 0.0
    %173 = vmatmul.mubr.f32.gmra.mrb[0].mxu0 %v76
    %v174 = vpop.f32.mrb[0].mxu0
    %v175 = vadd.f32 0.0, %v174
    %v176 = vpop.f32.mrb[0].mxu0
    %177 = vmatprep.mubr.f32.mxu0 0.0
    %178 = vmatmul.mubr.f32.gmra.mrb[0].mxu0 %v77
    %v179 = vpop.f32.mrb[0].mxu0
    %v180 = vadd.f32 0.0, %v179
    %v181 = vpop.f32.mrb[0].mxu0
    %182 = vmatprep.mubr.f32.mxu0 0.0
    %183 = vmatmul.mubr.f32.gmra.mrb[0].mxu0 %v78
    %v184 = vpop.f32.mrb[0].mxu0
    %v185 = vadd.f32 0.0, %v184
    %v186 = vpop.f32.mrb[0].mxu0
    %187 = vmatprep.mubr.f32.mxu0 0.0
    %188 = vmatmul.mubr.f32.gmra.mrb[0].mxu0 %v79
    %v189 = vpop.f32.mrb[0].mxu0
    %v190 = vadd.f32 0.0, %v189
    %v191 = vpop.f32.mrb[0].mxu0
    %192 = vmatprep.mubr.f32.mxu0 0.0
    %193 = vmatmul.mubr.f32.gmra.mrb[0].mxu0 %v80
    %v194 = vpop.f32.mrb[0].mxu0
    %v195 = vadd.f32 0.0, %v194
    %v196 = vpop.f32.mrb[0].mxu0
    %197 = vmatprep.mubr.f32.mxu0 0.0
    %198 = vmatmul.mubr.f32.gmra.mrb[0].mxu0 %v81
    %v199 = vpop.f32.mrb[0].mxu0
    %v200 = vadd.f32 0.0, %v199
    %v201 = vpop.f32.mrb[0].mxu0
    %202 = vmatprep.mubr.f32.mxu0 0.0
    %203 = vmatmul.mubr.f32.gmra.mrb[0].mxu0 %v82
    %v204 = vpop.f32.mrb[0].mxu0
    %v205 = vadd.f32 0.0, %v204
    %v206 = vpop.f32.mrb[0].mxu0
    %207 = vmatprep.mubr.f32.mxu0 0.0
    %208 = vmatmul.mubr.f32.gmra.mrb[0].mxu0 %v83
    %v209 = vpop.f32.mrb[0].mxu0
    %v210 = vadd.f32 0.0, %v209
    %v211 = vpop.f32.mrb[0].mxu0
    %212 = vmatprep.mubr.f32.mxu0 0.0
    %213 = vmatmul.mubr.f32.gmra.mrb[0].mxu0 %v84
    %v214 = vpop.f32.mrb[0].mxu0
    %v215 = vadd.f32 0.0, %v214
    %v216 = vpop.f32.mrb[0].mxu0
    %217 = vmatprep.mubr.f32.mxu0 0.0
    %218 = vmatmul.mubr.f32.gmra.mrb[0].mxu0 %v85
    %v219 = vpop.f32.mrb[0].mxu0
    %v220 = vadd.f32 0.0, %v219
    %v221 = vpop.f32.mrb[0].mxu0
    %222 = vmatprep.mubr.f32.mxu0 0.0
    %223 = vmatmul.mubr.f32.gmra.mrb[0].mxu0 %v86
    %v224 = vpop.f32.mrb[0].mxu0
    %v225 = vadd.f32 0.0, %v224
    %v226 = vpop.f32.mrb[0].mxu0
    %227 = vmatprep.mubr.f32.mxu0 0.0
    %228 = vmatmul.mubr.f32.gmra.mrb[0].mxu0 %v87
    %v229 = vpop.f32.mrb[0].mxu0
    %v230 = vadd.f32 0.0, %v229
    %v231 = vpop.f32.mrb[0].mxu0
    %232 = vmatprep.mubr.f32.mxu0 0.0
    %233 = vmatmul.mubr.f32.gmra.mrb[0].mxu0 %v88
    %v234 = vpop.f32.mrb[0].mxu0
    %v235 = vadd.f32 0.0, %v234
    %v236 = vpop.f32.mrb[0].mxu0
    %237 = vmatprep.mubr.f32.mxu0 0.0
    %238 = vmatmul.mubr.f32.gmra.mrb[0].mxu0 %v89
    %v239 = vpop.f32.mrb[0].mxu0
    %v240 = vadd.f32 0.0, %v239
    %v241 = vpop.f32.mrb[0].mxu0
    %242 = vmatprep.mubr.f32.mxu0 0.0
    %243 = vmatmul.mubr.f32.gmra.mrb[0].mxu0 %v90
    %v244 = vpop.f32.mrb[0].mxu0
    %v245 = vadd.f32 0.0, %v244
    %v246 = vpop.f32.mrb[0].mxu0
    %247 = vmatprep.mubr.f32.mxu0 0.0
    %248 = vmatmul.mubr.f32.gmra.mrb[0].mxu0 %v91
    %v249 = vpop.f32.mrb[0].mxu0
    %v250 = vadd.f32 0.0, %v249
    %v251 = vpop.f32.mrb[0].mxu0
    %252 = vdwg.mxu0
    %v253 = vld [vmem:[#allocation2] sm:$0xff]
    %v254 = vld [vmem:[#allocation2 + $0x8] sm:$0xff]
    %v255 = vld [vmem:[#allocation2 + $0x10] sm:$0xff]
    %v256 = vld [vmem:[#allocation2 + $0x18] sm:$0xff]
    %v257 = vld [vmem:[#allocation2 + $0x20] sm:$0xff]
    %v258 = vld [vmem:[#allocation2 + $0x28] sm:$0xff]
    %v259 = vld [vmem:[#allocation2 + $0x30] sm:$0xff]
    %v260 = vld [vmem:[#allocation2 + $0x38] sm:$0xff]
    %v261 = vld [vmem:[#allocation2 + $0x40] sm:$0xff]
    %v262 = vld [vmem:[#allocation2 + $0x48] sm:$0xff]
    %v263 = vld [vmem:[#allocation2 + $0x50] sm:$0xff]
    %v264 = vld [vmem:[#allocation2 + $0x58] sm:$0xff]
    %v265 = vld [vmem:[#allocation2 + $0x60] sm:$0xff]
    %v266 = vld [vmem:[#allocation2 + $0x68] sm:$0xff]
    %v267 = vld [vmem:[#allocation2 + $0x70] sm:$0xff]
    %v268 = vld [vmem:[#allocation2 + $0x78] sm:$0xff]
    %v269 = vld [vmem:[#allocation3] sm:$0xff]
    %v270 = vld [vmem:[#allocation3 + $0x8] sm:$0xff]
    %v271 = vld [vmem:[#allocation3 + $0x10] sm:$0xff]
    %v272 = vld [vmem:[#allocation3 + $0x18] sm:$0xff]
    %v273 = vld [vmem:[#allocation3 + $0x20] sm:$0xff]
    %v274 = vld [vmem:[#allocation3 + $0x28] sm:$0xff]
    %v275 = vld [vmem:[#allocation3 + $0x30] sm:$0xff]
    %v276 = vld [vmem:[#allocation3 + $0x38] sm:$0xff]
    %v277 = vld [vmem:[#allocation3 + $0x40] sm:$0xff]
    %v278 = vld [vmem:[#allocation3 + $0x48] sm:$0xff]
    %v279 = vld [vmem:[#allocation3 + $0x50] sm:$0xff]
    %v280 = vld [vmem:[#allocation3 + $0x58] sm:$0xff]
    %v281 = vld [vmem:[#allocation3 + $0x60] sm:$0xff]
    %v282 = vld [vmem:[#allocation3 + $0x68] sm:$0xff]
    %v283 = vld [vmem:[#allocation3 + $0x70] sm:$0xff]
    %v284 = vld [vmem:[#allocation3 + $0x78] sm:$0xff]
    %285 = vmatprep.subr.mxu0 0.0
    %286 = vmatpush1.msra.mxu0 %v175
    %287 = vmatprep.subr.mxu0 0.0
    %288 = vmatpush1.msra.mxu0 %v180
    %289 = vmatprep.subr.mxu0 0.0
    %290 = vmatpush1.msra.mxu0 %v185
    %291 = vmatprep.subr.mxu0 0.0
    %292 = vmatpush1.msra.mxu0 %v190
    %293 = vmatprep.subr.mxu0 0.0
    %294 = vmatpush1.msra.mxu0 %v195
    %295 = vmatprep.subr.mxu0 0.0
    %296 = vmatpush1.msra.mxu0 %v200
    %297 = vmatprep.subr.mxu0 0.0
    %298 = vmatpush1.msra.mxu0 %v205
    %299 = vmatprep.subr.mxu0 0.0
    %300 = vmatpush1.msra.mxu0 %v210
    %301 = vmatprep.subr.mxu0 0.0
    %302 = vmatpush1.msra.mxu0 %v215
    %303 = vmatprep.subr.mxu0 0.0
    %304 = vmatpush1.msra.mxu0 %v220
    %305 = vmatprep.subr.mxu0 0.0
    %306 = vmatpush1.msra.mxu0 %v225
    %307 = vmatprep.subr.mxu0 0.0
    %308 = vmatpush1.msra.mxu0 %v230
    %309 = vmatprep.subr.mxu0 0.0
    %310 = vmatpush1.msra.mxu0 %v235
    %311 = vmatprep.subr.mxu0 0.0
    %312 = vmatpush1.msra.mxu0 %v240
    %313 = vmatprep.subr.mxu0 0.0
    %314 = vmatpush1.msra.mxu0 %v245
    %315 = vmatprep.subr.mxu0 0.0
    %316 = vmatpush1.msra.mxu0 %v250
    %317 = vmatprep.subr.mxu0 0.0
    %318 = vmatpush1.msra.mxu0 0.0
    %319 = vmatprep.subr.mxu0 0.0
    %320 = vmatpush1.msra.mxu0 0.0
    %321 = vmatprep.subr.mxu0 0.0
    %322 = vmatpush1.msra.mxu0 0.0
    %323 = vmatprep.subr.mxu0 0.0
    %324 = vmatpush1.msra.mxu0 0.0
    %325 = vmatprep.subr.mxu0 0.0
    %326 = vmatpush1.msra.mxu0 0.0
    %327 = vmatprep.subr.mxu0 0.0
    %328 = vmatpush1.msra.mxu0 0.0
    %329 = vmatprep.subr.mxu0 0.0
    %330 = vmatpush1.msra.mxu0 0.0
    %331 = vmatprep.subr.mxu0 0.0
    %332 = vmatpush1.msra.mxu0 0.0
    %333 = vmatprep.subr.mxu0 0.0
    %334 = vmatpush1.msra.mxu0 0.0
    %335 = vmatprep.subr.mxu0 0.0
    %336 = vmatpush1.msra.mxu0 0.0
    %337 = vmatprep.subr.mxu0 0.0
    %338 = vmatpush1.msra.mxu0 0.0
    %339 = vmatprep.subr.mxu0 0.0
    %340 = vmatpush1.msra.mxu0 0.0
    %341 = vmatprep.subr.mxu0 0.0
    %342 = vmatpush1.msra.mxu0 0.0
    %343 = vmatprep.subr.mxu0 0.0
    %344 = vmatpush1.msra.mxu0 0.0
    %345 = vmatprep.subr.mxu0 0.0
    %346 = vmatpush1.msra.mxu0 0.0
    %347 = vmatprep.subr.mxu0 0.0
    %348 = vmatpush1.msra.mxu0 0.0
    %349 = vmatprep.mubr.f32.mxu0 0.0
    %350 = vmatmul.mubr.f32.gmra.mrb[0].mxu0 %v269
    %v351 = vpop.f32.mrb[0].mxu0
    %v352 = vadd.f32 0.0, %v351
    %v353 = vpop.f32.mrb[0].mxu0
    %354 = vmatprep.mubr.f32.mxu0 0.0
    %355 = vmatmul.mubr.f32.gmra.mrb[0].mxu0 %v270
    %v356 = vpop.f32.mrb[0].mxu0
    %v357 = vadd.f32 0.0, %v356
    %v358 = vpop.f32.mrb[0].mxu0
    %359 = vmatprep.mubr.f32.mxu0 0.0
    %360 = vmatmul.mubr.f32.gmra.mrb[0].mxu0 %v271
    %v361 = vpop.f32.mrb[0].mxu0
    %v362 = vadd.f32 0.0, %v361
    %v363 = vpop.f32.mrb[0].mxu0
    %364 = vmatprep.mubr.f32.mxu0 0.0
    %365 = vmatmul.mubr.f32.gmra.mrb[0].mxu0 %v272
    %v366 = vpop.f32.mrb[0].mxu0
    %v367 = vadd.f32 0.0, %v366
    %v368 = vpop.f32.mrb[0].mxu0
    %369 = vmatprep.mubr.f32.mxu0 0.0
    %370 = vmatmul.mubr.f32.gmra.mrb[0].mxu0 %v273
    %v371 = vpop.f32.mrb[0].mxu0
    %v372 = vadd.f32 0.0, %v371
    %v373 = vpop.f32.mrb[0].mxu0
    %374 = vmatprep.mubr.f32.mxu0 0.0
    %375 = vmatmul.mubr.f32.gmra.mrb[0].mxu0 %v274
    %v376 = vpop.f32.mrb[0].mxu0
    %v377 = vadd.f32 0.0, %v376
    %v378 = vpop.f32.mrb[0].mxu0
    %379 = vmatprep.mubr.f32.mxu0 0.0
    %380 = vmatmul.mubr.f32.gmra.mrb[0].mxu0 %v275
    %v381 = vpop.f32.mrb[0].mxu0
    %v382 = vadd.f32 0.0, %v381
    %v383 = vpop.f32.mrb[0].mxu0
    %384 = vmatprep.mubr.f32.mxu0 0.0
    %385 = vmatmul.mubr.f32.gmra.mrb[0].mxu0 %v276
    %v386 = vpop.f32.mrb[0].mxu0
    %v387 = vadd.f32 0.0, %v386
    %v388 = vpop.f32.mrb[0].mxu0
    %389 = vmatprep.mubr.f32.mxu0 0.0
    %390 = vmatmul.mubr.f32.gmra.mrb[0].mxu0 %v277
    %v391 = vpop.f32.mrb[0].mxu0
    %v392 = vadd.f32 0.0, %v391
    %v393 = vpop.f32.mrb[0].mxu0
    %394 = vmatprep.mubr.f32.mxu0 0.0
    %395 = vmatmul.mubr.f32.gmra.mrb[0].mxu0 %v278
    %v396 = vpop.f32.mrb[0].mxu0
    %v397 = vadd.f32 0.0, %v396
    %v398 = vpop.f32.mrb[0].mxu0
    %399 = vmatprep.mubr.f32.mxu0 0.0
    %400 = vmatmul.mubr.f32.gmra.mrb[0].mxu0 %v279
    %v401 = vpop.f32.mrb[0].mxu0
    %v402 = vadd.f32 0.0, %v401
    %v403 = vpop.f32.mrb[0].mxu0
    %404 = vmatprep.mubr.f32.mxu0 0.0
    %405 = vmatmul.mubr.f32.gmra.mrb[0].mxu0 %v280
    %v406 = vpop.f32.mrb[0].mxu0
    %v407 = vadd.f32 0.0, %v406
    %v408 = vpop.f32.mrb[0].mxu0
    %409 = vmatprep.mubr.f32.mxu0 0.0
    %410 = vmatmul.mubr.f32.gmra.mrb[0].mxu0 %v281
    %v411 = vpop.f32.mrb[0].mxu0
    %v412 = vadd.f32 0.0, %v411
    %v413 = vpop.f32.mrb[0].mxu0
    %414 = vmatprep.mubr.f32.mxu0 0.0
    %415 = vmatmul.mubr.f32.gmra.mrb[0].mxu0 %v282
    %v416 = vpop.f32.mrb[0].mxu0
    %v417 = vadd.f32 0.0, %v416
    %v418 = vpop.f32.mrb[0].mxu0
    %419 = vmatprep.mubr.f32.mxu0 0.0
    %420 = vmatmul.mubr.f32.gmra.mrb[0].mxu0 %v283
    %v421 = vpop.f32.mrb[0].mxu0
    %v422 = vadd.f32 0.0, %v421
    %v423 = vpop.f32.mrb[0].mxu0
    %424 = vmatprep.mubr.f32.mxu0 0.0
    %425 = vmatmul.mubr.f32.gmra.mrb[0].mxu0 %v284
    %v426 = vpop.f32.mrb[0].mxu0
    %v427 = vadd.f32 0.0, %v426
    %v428 = vpop.f32.mrb[0].mxu0
    %429 = vdwg.mxu0
    %v430 = vadd.f32 %v253, %v352
    %v431 = vadd.f32 %v254, %v357
    %v432 = vadd.f32 %v255, %v362
    %v433 = vadd.f32 %v256, %v367
    %v434 = vadd.f32 %v257, %v372
    %v435 = vadd.f32 %v258, %v377
    %v436 = vadd.f32 %v259, %v382
    %v437 = vadd.f32 %v260, %v387
    %v438 = vadd.f32 %v261, %v392
    %v439 = vadd.f32 %v262, %v397
    %v440 = vadd.f32 %v263, %v402
    %v441 = vadd.f32 %v264, %v407
    %v442 = vadd.f32 %v265, %v412
    %v443 = vadd.f32 %v266, %v417
    %v444 = vadd.f32 %v267, %v422
    %v445 = vadd.f32 %v268, %v427
    %446 = vst [vmem:[#allocation2] sm:$0xff] %v430
    %447 = vst [vmem:[#allocation2 + $0x8] sm:$0xff] %v431
    %448 = vst [vmem:[#allocation2 + $0x10] sm:$0xff] %v432
    %449 = vst [vmem:[#allocation2 + $0x18] sm:$0xff] %v433
    %450 = vst [vmem:[#allocation2 + $0x20] sm:$0xff] %v434
    %451 = vst [vmem:[#allocation2 + $0x28] sm:$0xff] %v435
    %452 = vst [vmem:[#allocation2 + $0x30] sm:$0xff] %v436
    %453 = vst [vmem:[#allocation2 + $0x38] sm:$0xff] %v437
    %454 = vst [vmem:[#allocation2 + $0x40] sm:$0xff] %v438
    %455 = vst [vmem:[#allocation2 + $0x48] sm:$0xff] %v439
    %456 = vst [vmem:[#allocation2 + $0x50] sm:$0xff] %v440
    %457 = vst [vmem:[#allocation2 + $0x58] sm:$0xff] %v441
    %458 = vst [vmem:[#allocation2 + $0x60] sm:$0xff] %v442
    %459 = vst [vmem:[#allocation2 + $0x68] sm:$0xff] %v443
    %460 = vst [vmem:[#allocation2 + $0x70] sm:$0xff] %v444
    %461 = vst [vmem:[#allocation2 + $0x78] sm:$0xff] %v445
    // Predicated region
    $region30: #{tpu_custom_call.1} parent=1 // pred_check
      %p462 = pneg %p56
    $region31: #{tpu_custom_call.1} parent=1 // pred_check_branch
      %464 = sbr.rel (%p462) target = $region33
    $region32: #{tpu_custom_call.1} parent=1 // pred_region
      %v465 = vld [vmem:[#allocation2] sm:$0xff]
      %v466 = vld [vmem:[#allocation2 + $0x8] sm:$0xff]
      %v467 = vld [vmem:[#allocation2 + $0x10] sm:$0xff]
      %v468 = vld [vmem:[#allocation2 + $0x18] sm:$0xff]
      %v469 = vld [vmem:[#allocation2 + $0x20] sm:$0xff]
      %v470 = vld [vmem:[#allocation2 + $0x28] sm:$0xff]
      %v471 = vld [vmem:[#allocation2 + $0x30] sm:$0xff]
      %v472 = vld [vmem:[#allocation2 + $0x38] sm:$0xff]
      %v473 = vld [vmem:[#allocation2 + $0x40] sm:$0xff]
      %v474 = vld [vmem:[#allocation2 + $0x48] sm:$0xff]
      %v475 = vld [vmem:[#allocation2 + $0x50] sm:$0xff]
      %v476 = vld [vmem:[#allocation2 + $0x58] sm:$0xff]
      %v477 = vld [vmem:[#allocation2 + $0x60] sm:$0xff]
      %v478 = vld [vmem:[#allocation2 + $0x68] sm:$0xff]
      %v479 = vld [vmem:[#allocation2 + $0x70] sm:$0xff]
      %v480 = vld [vmem:[#allocation2 + $0x78] sm:$0xff]
      %v481 = vmax.f32 %v465, 0.0
      %v482 = vmax.f32 %v466, 0.0
      %v483 = vmax.f32 %v467, 0.0
      %v484 = vmax.f32 %v468, 0.0
      %v485 = vmax.f32 %v469, 0.0
      %v486 = vmax.f32 %v470, 0.0
      %v487 = vmax.f32 %v471, 0.0
      %v488 = vmax.f32 %v472, 0.0
      %v489 = vmax.f32 %v473, 0.0
      %v490 = vmax.f32 %v474, 0.0
      %v491 = vmax.f32 %v475, 0.0
      %v492 = vmax.f32 %v476, 0.0
      %v493 = vmax.f32 %v477, 0.0
      %v494 = vmax.f32 %v478, 0.0
      %v495 = vmax.f32 %v479, 0.0
      %v496 = vmax.f32 %v480, 0.0
      %497 = vst [vmem:[#allocation9] sm:$0xff] %v481
      %498 = vst [vmem:[#allocation9 + $0x8] sm:$0xff] %v482
      %499 = vst [vmem:[#allocation9 + $0x10] sm:$0xff] %v483
      %500 = vst [vmem:[#allocation9 + $0x18] sm:$0xff] %v484
      %501 = vst [vmem:[#allocation9 + $0x20] sm:$0xff] %v485
      %502 = vst [vmem:[#allocation9 + $0x28] sm:$0xff] %v486
      %503 = vst [vmem:[#allocation9 + $0x30] sm:$0xff] %v487
      %504 = vst [vmem:[#allocation9 + $0x38] sm:$0xff] %v488
      %505 = vst [vmem:[#allocation9 + $0x40] sm:$0xff] %v489
      %506 = vst [vmem:[#allocation9 + $0x48] sm:$0xff] %v490
      %507 = vst [vmem:[#allocation9 + $0x50] sm:$0xff] %v491
      %508 = vst [vmem:[#allocation9 + $0x58] sm:$0xff] %v492
      %509 = vst [vmem:[#allocation9 + $0x60] sm:$0xff] %v493
      %510 = vst [vmem:[#allocation9 + $0x68] sm:$0xff] %v494
      %511 = vst [vmem:[#allocation9 + $0x70] sm:$0xff] %v495
      %512 = vst [vmem:[#allocation9 + $0x78] sm:$0xff] %v496
    $region33: #{tpu_custom_call.1} parent=1 // pred_fallthru
      _
    // Predicated region
    $region34: #{tpu_custom_call.1} parent=1 // pred_check
      _
    $region35: #{tpu_custom_call.1} parent=1 // pred_check_branch
      %514 = sbr.rel (0) target = $region37
    $region36: #{tpu_custom_call.1} parent=1 // pred_region
      %s516 = ssub.s32 2048, 2048
      %517 = vsyncadd [#allocation5], %s516
      %s518 = sshll.u32 [#allocation9], 4
      %s519 = int_to_ptr.vmem [resolvable:$true] %s518
      %524 = dma.vmem_to_hbm [thread:$0]  %s519, 2048, %s3, [#allocation5], 128, 128, 8
    $region37: #{tpu_custom_call.1} parent=1 // pred_fallthru
      _
    // Predicated region
    $region38: #{tpu_custom_call.1} parent=1 // pred_check
      _
    $region39: #{tpu_custom_call.1} parent=1 // pred_check_branch
      %526 = sbr.rel (0) target = $region41
    $region40: #{tpu_custom_call.1} parent=1 // pred_region
      %527 = dma.done [#allocation5], 2048
    $region41: #{tpu_custom_call.1} parent=1 // pred_fallthru
      _
    %528 = vsyncpa [#allocation4], 1
    %529 = vsyncpa [#allocation7], 1
    %530 = vsyncpa [#allocation5], 1

</llo_original>
